<compile_context>
chip_gen: v7x
topology: tpu7x:2x2x1
jax: 0.10.0
libtpu: 0.0.40
codegen_flags: <defaults>
</compile_context>

<pallas_src>
import jax
import jax.numpy as jnp
from jax.experimental import pallas as pl
from jax.experimental.pallas import tpu as pltpu


def _flatten_copy_kernel(x_ref, o_ref):
    # Identity copy of one sublane/lane-dense (block_rows, C) slab tile.
    o_ref[...] = x_ref[...]


def flatten_pallas(x, *, target_block_bytes=2 * 1024 * 1024, materialize=True):
    """Pallas equivalent of torch `x.view(x.size(0), -1)`.

    Args:
      x: array of shape (N, ...) — e.g. NCHW activations.
      target_block_bytes: approximate per-buffer VMEM block size for the copy.
      materialize: if False, return the pure metadata view (no Pallas copy).
        Flatten is a view in PyTorch; skipping the copy is the real win when
        the consumer can fuse it.

    Returns:
      Array of shape (N, prod(rest)) with the same dtype as `x`.
    """
    n = x.shape[0]
    d = 1
    for s in x.shape[1:]:
        d *= s
    total = n * d

    if not materialize:
        # TODO(synk): prefer this path (or fuse into the consumer's BlockSpec)
        # — a materialized copy costs 2x the tensor size in HBM traffic.
        return x.reshape(n, d)

    itemsize = jnp.dtype(x.dtype).itemsize

    # Row-major flatten: identical element ordering to torch .view(n, -1).
    flat = x.reshape(total)

    # ---- choose a sublane/lane-dense slab presentation (R, C) --------------
    # Prefer a wide lane dimension that divides the total element count; if
    # nothing divides (total not a multiple of 128), pad a tiny tail.
    pad = 0
    for cand in (1024, 512, 256, 128):
        if total % cand == 0:
            C = cand
            break
    else:
        C = 128
        pad = (-total) % C
    if pad:
        flat = jnp.pad(flat, (0, pad))
    R = (total + pad) // C

    # Rows per block: multiple of the sublane packing for this dtype, sized so
    # one block buffer is ~target_block_bytes.
    sub = max(8, 32 // itemsize)  # 8 for f32, 16 for bf16, 32 for int8
    if R <= sub:
        block_rows = R  # tiny input: block spans the full (short) row axis
    else:
        block_rows = (target_block_bytes // (C * itemsize)) // sub * sub
        block_rows = max(sub, block_rows)
        block_rows = min(block_rows, (R // sub) * sub)
    grid = (pl.cdiv(R, block_rows),)

    block_bytes = block_rows * C * itemsize
    # in + out, double-buffered, plus slack; floor at 16 MiB, cap below v7x's
    # 64 MiB physical VMEM.
    vmem_limit = min(64 << 20, max(16 << 20, 6 * block_bytes + (1 << 20)))

    slab = flat.reshape(R, C)

    out = pl.pallas_call(
        _flatten_copy_kernel,
        out_shape=jax.ShapeDtypeStruct((R, C), x.dtype),
        grid_spec=pltpu.PrefetchScalarGridSpec(
            num_scalar_prefetch=0,
            grid=grid,
            in_specs=[pl.BlockSpec((block_rows, C), lambda i: (i, 0))],
            out_specs=pl.BlockSpec((block_rows, C), lambda i: (i, 0)),
        ),
        compiler_params=pltpu.CompilerParams(
            dimension_semantics=("parallel",),  # shards across v7x's 2 TCs
            vmem_limit_bytes=vmem_limit,
        ),
    )(slab)

    out_flat = out.reshape(-1)
    if pad:
        out_flat = out_flat[:total]
    return out_flat.reshape(n, d)


if __name__ == "__main__":
    # Small CIFAR-like activations: batch=2, channels=4, spatial=16x16.
    key = jax.random.PRNGKey(0)
    x = jax.random.normal(key, (2, 4, 16, 16), dtype=jnp.float32)

    out = flatten_pallas(x)
    out = jax.block_until_ready(out)

    # Reference: torch `input.view(input.size(0), -1)` == row-major reshape.
    ref = x.reshape(x.shape[0], -1)

    assert out.shape == (2, 4 * 16 * 16), out.shape
    assert out.dtype == x.dtype
    assert jnp.array_equal(out, ref), "Pallas flatten mismatch vs reference"

    print("KERNEL_OK")
</pallas_src>

<mosaic_0001>
module attributes {stable_mosaic.version = 11 : i64} {
  func.func @_flatten_copy_kernel(%arg0: i32, %arg1: memref<2x1024xf32, #tpu.memory_space<vmem>>, %arg2: memref<2x1024xf32, #tpu.memory_space<vmem>>) attributes {dimension_semantics = [#tpu.dimension_semantics<parallel>], iteration_bounds = array<i64: 1>, scalar_prefetch = 0 : i64, scratch_operands = 0 : i64, tpu.core_type = #tpu.core_type<tc>, window_params = [{transform_indices = @transform_0, window_bounds = array<i64: 2, 1024>}, {transform_indices = @transform_1, window_bounds = array<i64: 2, 1024>}]} {
    %c0 = arith.constant 0 : index
    %c0_0 = arith.constant 0 : index
    %0 = vector.load %arg1[%c0, %c0_0] : memref<2x1024xf32, #tpu.memory_space<vmem>>, vector<2x1024xf32>
    %c0_1 = arith.constant 0 : index
    %c0_2 = arith.constant 0 : index
    %1 = vector.load %arg2[%c0_1, %c0_2] : memref<2x1024xf32, #tpu.memory_space<vmem>>, vector<2x1024xf32>
    tpu.vector_store %arg2[%c0_1, %c0_2], %0 {strides = array<i32>} : memref<2x1024xf32, #tpu.memory_space<vmem>>, vector<2x1024xf32>,
    return
  }
  func.func @transform_0(%arg0: i32) -> (i32, i32) {
    %c0_i32 = arith.constant 0 : i32
    %c0_i32_0 = arith.constant 0 : i32
    return %arg0, %c0_i32 : i32, i32
  }
  func.func @transform_1(%arg0: i32) -> (i32, i32) {
    %c0_i32 = arith.constant 0 : i32
    %c0_i32_0 = arith.constant 0 : i32
    return %arg0, %c0_i32 : i32, i32
  }
}

</mosaic_0001>

<llo_original>
// kernel: tpu_custom_call.1
$region0: #{tpu_custom_call.1}
  #allocation0 [shape = 'u32[]', space=smem, size = 0x4, offset = 0x4, fixed_abs, tag = 'smem constant byte address 0x4 - core index']
  #allocation1 [shape = 'u32[144,128]{1,0:T(1,128)}', space=vmem, size = 0x12000, scoped, tag = 'internal scratch']
  %s0 = inlined_call_operand.hbm [shape: f32[2,1024], index: 0, kind: input, shape index: {}]
  %s1 = inlined_call_operand.hbm [shape: f32[2,1024], index: 1, kind: output, shape index: {}]
  %s2 = sld [smem:[#allocation0]]
  $region18: #{tpu_custom_call.1} parent=0
    _
  %s4 = ssub.s32 1, %s2
  %s5 = scalar_select 0, %s4, %s2
  $region1: #{tpu_custom_call.1} parent=0
    #allocation2 [shape = 'u8[8192]{0}', space=vmem, size = 0x2000, scoped, tag = 'input window, operand 0, single buffered']
    #allocation3 [shape = 's32[1]{0}', space=sflag, size = 0x4, scoped, tag = 'scoped memory for tpu_custom_call.1']
    #allocation4 [shape = 's32[1]{0}', space=sflag, size = 0x4, scoped, tag = 'scoped memory for tpu_custom_call.1']
    #allocation5 [shape = 'u8[8192]{0}', space=vmem, size = 0x2000, scoped, tag = 'output window, operand 0, single buffered']
    %6 = vsyncpa [#allocation3], 0
    %7 = vsyncpa [#allocation4], 0
    // Predicated region
    $region2: #{tpu_custom_call.1} parent=1 // pred_check
      _
    $region3: #{tpu_custom_call.1} parent=1 // pred_check_branch
      %9 = sbr.rel (0) target = $region5
    $region4: #{tpu_custom_call.1} parent=1 // pred_region
      %s11 = ssub.s32 256, 256
      %12 = vsyncadd [#allocation3], %s11
      %s14 = sshll.u32 [#allocation2], 4
      %s15 = int_to_ptr.vmem [resolvable:$true] %s14
      %17 = dma.hbm_to_vmem [thread:$0]  %s0, 256, %s15, [#allocation3]
    $region5: #{tpu_custom_call.1} parent=1 // pred_fallthru
      _
    // Predicated region
    $region6: #{tpu_custom_call.1} parent=1 // pred_check
      _
    $region7: #{tpu_custom_call.1} parent=1 // pred_check_branch
      %19 = sbr.rel (0) target = $region9
    $region8: #{tpu_custom_call.1} parent=1 // pred_region
      %20 = dma.done [#allocation3], 256
    $region9: #{tpu_custom_call.1} parent=1 // pred_fallthru
      _
    %v21 = vld [vmem:[#allocation2] sm:$0xff]
    %v22 = vld [vmem:[#allocation2 + $0x8] sm:$0xff]
    %23 = vst [vmem:[#allocation5] sm:$0xff] %v21
    %24 = vst [vmem:[#allocation5 + $0x8] sm:$0xff] %v22
    // Predicated region
    $region10: #{tpu_custom_call.1} parent=1 // pred_check
      _
    $region11: #{tpu_custom_call.1} parent=1 // pred_check_branch
      %26 = sbr.rel (0) target = $region13
    $region12: #{tpu_custom_call.1} parent=1 // pred_region
      %s28 = ssub.s32 256, 256
      %29 = vsyncadd [#allocation4], %s28
      %s31 = sshll.u32 [#allocation5], 4
      %s32 = int_to_ptr.vmem [resolvable:$true] %s31
      %34 = dma.vmem_to_hbm [thread:$0]  %s32, 256, %s1, [#allocation4]
    $region13: #{tpu_custom_call.1} parent=1 // pred_fallthru
      _
    // Predicated region
    $region14: #{tpu_custom_call.1} parent=1 // pred_check
      _
    $region15: #{tpu_custom_call.1} parent=1 // pred_check_branch
      %36 = sbr.rel (0) target = $region17
    $region16: #{tpu_custom_call.1} parent=1 // pred_region
      %37 = dma.done [#allocation4], 256
    $region17: #{tpu_custom_call.1} parent=1 // pred_fallthru
      _
    %38 = vsyncpa [#allocation3], 1
    %39 = vsyncpa [#allocation4], 1

</llo_original>
